<compile_context>
chip_gen: v5e
topology: v5e:2x2
jax: 0.10.0
libtpu: 0.0.40
codegen_flags: <defaults>
</compile_context>

<pallas_src>
import functools

import jax
import jax.numpy as jnp
from jax.experimental import pallas as pl
from jax.experimental.pallas import tpu as pltpu


# ----------------------------------------------------------------------------
# helpers
# ----------------------------------------------------------------------------
def _round_up(x, m):
    return (x + m - 1) // m * m


def _pick_tile(dim, cap, unit):
    """Largest multiple of `unit` that divides `dim` and is <= cap (dim % unit == 0)."""
    t = max(unit, (min(cap, dim) // unit) * unit)
    while dim % t != 0:
        t -= unit
    return t


def _pad_dim(d, tile_cap=512):
    """Pad a feature dim to a lane multiple whose tiles don't collapse to 128."""
    p = _round_up(d, 128)
    if p <= tile_cap:
        return p                      # single full-extent tile
    if _pick_tile(p, tile_cap, 128) >= 256:
        return p                      # already has a >=256-wide divisor
    return _round_up(d, 256)          # <=128 extra cols, guarantees >=256-wide tiles


def _vmem_budget_bytes():
    """Generation-aware usable VMEM: ~3/4 of physical (96 MiB v5e/v6e, 48 MiB v7x)."""
    cap = 64 << 20
    try:
        info = pltpu.get_tpu_info()
        cap = int(getattr(info, "vmem_capacity_bytes", cap)) or cap
    except Exception:
        pass
    return (cap * 3) // 4


# ----------------------------------------------------------------------------
# Kernel 1: fused whole-MLP (weights resident in VMEM, activations never leave)
# ----------------------------------------------------------------------------
def _fused_mlp_kernel(*refs, n_layers):
    x_ref = refs[0]
    w_refs = refs[1:1 + n_layers]
    b_refs = refs[1 + n_layers:1 + 2 * n_layers]
    o_ref = refs[1 + 2 * n_layers]

    h = x_ref[...]  # bf16 [tm, Din_pad]
    for l in range(n_layers):
        acc = jnp.dot(h, w_refs[l][...], preferred_element_type=jnp.float32)
        acc = acc + b_refs[l][...].astype(jnp.float32)  # (1, N_pad) broadcast
        if l < n_layers - 1:
            acc = jnp.maximum(acc, 0.0)        # ReLU on hidden layers
            h = acc.astype(jnp.bfloat16)       # bf16 feed to next MXU matmul
        else:
            h = acc                            # identity on output layer
    o_ref[...] = h.astype(o_ref.dtype)


def _fused_mlp_call(xp, prep, tm, vmem_limit, *, single_buffer_weights, out_dtype):
    m_pad, din_pad = xp.shape
    n_layers = len(prep)
    dout_pad = prep[-1][0].shape[1]
    out_isize = jnp.dtype(out_dtype).itemsize

    # Resident weights/biases: constant index_map; single-buffer them so they
    # don't eat 2x VMEM for a DMA that happens only once.
    resident = dict(pipeline_mode=pl.Buffered(1)) if single_buffer_weights else {}

    in_specs = [pl.BlockSpec((tm, din_pad), lambda i: (i, 0))]
    for w, _ in prep:
        kp, np_ = w.shape
        in_specs.append(pl.BlockSpec((kp, np_), lambda i: (0, 0), **resident))
    for _, b in prep:
        np_ = b.shape[1]
        in_specs.append(pl.BlockSpec((1, np_), lambda i: (0, 0), **resident))

    flops = 2 * m_pad * sum(w.shape[0] * w.shape[1] for w, _ in prep)
    bytes_accessed = int(xp.size * 2
                         + sum(w.size * 2 + b.size * 4 for w, b in prep)
                         + m_pad * dout_pad * out_isize)

    kernel = functools.partial(_fused_mlp_kernel, n_layers=n_layers)
    return pl.pallas_call(
        kernel,
        out_shape=jax.ShapeDtypeStruct((m_pad, dout_pad), out_dtype),
        grid=(m_pad // tm,),
        in_specs=in_specs,
        out_specs=pl.BlockSpec((tm, dout_pad), lambda i: (i, 0)),
        compiler_params=pltpu.CompilerParams(
            dimension_semantics=("parallel",),
            vmem_limit_bytes=int(vmem_limit)),
        cost_estimate=pl.CostEstimate(
            flops=int(flops), transcendentals=0, bytes_accessed=bytes_accessed),
    )(xp, *(w for w, _ in prep), *(b for _, b in prep))


# ----------------------------------------------------------------------------
# Kernel 2: one layer, (M, N, K)-tiled matmul + bias + optional ReLU
# ----------------------------------------------------------------------------
def _linear_tiled_kernel(x_ref, w_ref, b_ref, o_ref, acc_ref, *, apply_relu):
    k = pl.program_id(2)

    @pl.when(k == 0)
    def _():
        acc_ref[...] = jnp.zeros_like(acc_ref)

    acc_ref[...] += jnp.dot(x_ref[...], w_ref[...],
                            preferred_element_type=jnp.float32)

    @pl.when(k == pl.num_programs(2) - 1)
    def _():
        acc = acc_ref[...] + b_ref[...].astype(jnp.float32)
        if apply_relu:
            acc = jnp.maximum(acc, 0.0)
        o_ref[...] = acc.astype(o_ref.dtype)


def _linear_single_k_kernel(x_ref, w_ref, b_ref, o_ref, *, apply_relu):
    # K fits one tile: no scratch, no predicated init/finalize.
    acc = jnp.dot(x_ref[...], w_ref[...], preferred_element_type=jnp.float32)
    acc = acc + b_ref[...].astype(jnp.float32)
    if apply_relu:
        acc = jnp.maximum(acc, 0.0)
    o_ref[...] = acc.astype(o_ref.dtype)


def _linear_layer_call(xp, wp, bp, *, apply_relu, out_dtype, tm, vmem_limit):
    m_pad, k_pad = xp.shape
    _, n_pad = wp.shape
    tn = _pick_tile(n_pad, 512, 128)
    tk = _pick_tile(k_pad, 2048, 128) if k_pad % 128 == 0 else k_pad
    k_steps = k_pad // tk

    flops = 2 * m_pad * k_pad * n_pad
    bytes_accessed = int(xp.size * 2 + wp.size * 2 + bp.size * 4
                         + m_pad * n_pad * jnp.dtype(out_dtype).itemsize)
    cost = pl.CostEstimate(flops=int(flops), transcendentals=0,
                           bytes_accessed=bytes_accessed)

    if k_steps == 1:
        kernel = functools.partial(_linear_single_k_kernel, apply_relu=apply_relu)
        return pl.pallas_call(
            kernel,
            out_shape=jax.ShapeDtypeStruct((m_pad, n_pad), out_dtype),
            grid=(m_pad // tm, n_pad // tn),
            in_specs=[
                pl.BlockSpec((tm, k_pad), lambda i, j: (i, 0)),
                pl.BlockSpec((k_pad, tn), lambda i, j: (0, j)),
                pl.BlockSpec((1, tn), lambda i, j: (0, j)),
            ],
            out_specs=pl.BlockSpec((tm, tn), lambda i, j: (i, j)),
            compiler_params=pltpu.CompilerParams(
                dimension_semantics=("parallel", "parallel"),
                vmem_limit_bytes=int(vmem_limit)),
            cost_estimate=cost,
        )(xp, wp, bp)

    kernel = functools.partial(_linear_tiled_kernel, apply_relu=apply_relu)
    return pl.pallas_call(
        kernel,
        out_shape=jax.ShapeDtypeStruct((m_pad, n_pad), out_dtype),
        grid=(m_pad // tm, n_pad // tn, k_steps),  # reduction axis last
        in_specs=[
            pl.BlockSpec((tm, tk), lambda i, j, k: (i, k)),
            pl.BlockSpec((tk, tn), lambda i, j, k: (k, j)),
            pl.BlockSpec((1, tn), lambda i, j, k: (0, j)),
        ],
        out_specs=pl.BlockSpec((tm, tn), lambda i, j, k: (i, j)),
        scratch_shapes=[pltpu.VMEM((tm, tn), jnp.float32)],
        compiler_params=pltpu.CompilerParams(
            dimension_semantics=("parallel", "parallel", "arbitrary"),
            vmem_limit_bytes=int(vmem_limit)),
        cost_estimate=cost,
    )(xp, wp, bp)


# ----------------------------------------------------------------------------
# Parameter init / prep and forward wrapper
# ----------------------------------------------------------------------------
def init_mlp_params(key, insize, outsize, hsizes):
    """Deterministic init, shapes match nn.Linear layers of MLP (W stored [in, out])."""
    sizes = [insize] + list(hsizes) + [outsize]
    params = []
    for k in range(len(sizes) - 1):
        key, kw, kb = jax.random.split(key, 3)
        bound = 1.0 / jnp.sqrt(sizes[k])
        w = jax.random.uniform(kw, (sizes[k], sizes[k + 1]), jnp.float32, -bound, bound)
        b = jax.random.uniform(kb, (sizes[k + 1],), jnp.float32, -bound, bound)
        params.append((w, b))
    return params


def prepare_mlp_params(params):
    """Pad feature dims (first-layer input only to 16; others tile-friendly 128+)
    and pre-cast weights to bf16 (once)."""
    prep = []
    for l, (w, b) in enumerate(params):
        din, dout = w.shape
        dinp = _round_up(din, 16) if l == 0 else _pad_dim(din)
        doutp = _pad_dim(dout)
        wp = jnp.zeros((dinp, doutp), jnp.bfloat16)
        wp = wp.at[:din, :dout].set(w.astype(jnp.bfloat16))
        bp = jnp.zeros((1, doutp), jnp.float32)
        bp = bp.at[0, :dout].set(b.astype(jnp.float32))
        prep.append((wp, bp))
    return prep


def _fused_vmem_bytes(tm, din_pad, prep, *, single_buffer_weights):
    nbuf = 1 if single_buffer_weights else 2
    w_bytes = sum(nbuf * (w.size * w.dtype.itemsize + b.size * b.dtype.itemsize)
                  for w, b in prep)
    widest = max([din_pad] + [w.shape[1] for w, _ in prep])
    io_bytes = 2 * tm * din_pad * 2 + 2 * tm * prep[-1][0].shape[1] * 4
    act_bytes = 2 * tm * widest * 4   # live f32 activations between layers (spill headroom)
    return int(w_bytes + io_bytes + act_bytes)


def mlp_forward(x, prepared_params, outsize, *, force_layerwise=False,
                out_dtype=jnp.float32):
    """x: [batch, insize] (f32) -> [batch, outsize] (out_dtype, default f32)."""
    B, Din = x.shape
    n_layers = len(prepared_params)
    din_pad = prepared_params[0][0].shape[0]

    vmem_budget = _vmem_budget_bytes()
    tm_cap = 512 if vmem_budget >= (64 << 20) else 256  # bigger batch panels on 128-MiB chips

    # Batch padding decoupled from tm (pad only to sublane-pair multiple).
    m_pad = _round_up(B, 16)
    tm = _pick_tile(m_pad, tm_cap, 16)
    if m_pad // tm == 1:
        tm = m_pad // 2  # guarantee >=2 "parallel" steps (keeps both v7x TCs busy)

    # Pad/cast x once (no Din blow-up: first-layer K kept at its true 16-aligned size).
    xb = x.astype(jnp.bfloat16)
    if m_pad != B or din_pad != Din:
        xb = jnp.pad(xb, ((0, m_pad - B), (0, din_pad - Din)))

    use_fused = (not force_layerwise
                 and _fused_vmem_bytes(tm, din_pad, prepared_params,
                                       single_buffer_weights=True) < vmem_budget)

    out = None
    if use_fused:
        try:
            out = _fused_mlp_call(xb, prepared_params, tm, vmem_budget,
                                  single_buffer_weights=True, out_dtype=out_dtype)
        except Exception:
            # Buffered(1) not supported / unexpected lowering issue: retry with
            # default double-buffering if it still fits, else fall through.
            if _fused_vmem_bytes(tm, din_pad, prepared_params,
                                 single_buffer_weights=False) < vmem_budget:
                out = _fused_mlp_call(xb, prepared_params, tm, vmem_budget,
                                      single_buffer_weights=False, out_dtype=out_dtype)

    if out is None:
        h = xb
        for idx, (w, b) in enumerate(prepared_params):
            last = idx == n_layers - 1
            h = _linear_layer_call(
                h, w, b,
                apply_relu=not last,
                out_dtype=out_dtype if last else jnp.bfloat16,
                tm=tm, vmem_limit=vmem_budget)
        out = h

    return out[:B, :outsize]


def mlp_reference(x, params):
    """Pure-JAX reference replicating the kernel's bf16-in / f32-accumulate recipe."""
    h = x.astype(jnp.bfloat16).astype(jnp.float32)
    n = len(params)
    for idx, (w, b) in enumerate(params):
        wf = w.astype(jnp.bfloat16).astype(jnp.float32)
        h = h @ wf + b.astype(jnp.float32)
        if idx < n - 1:
            h = jnp.maximum(h, 0.0)
            h = h.astype(jnp.bfloat16).astype(jnp.float32)
    return h


# ----------------------------------------------------------------------------
# main
# ----------------------------------------------------------------------------
if __name__ == "__main__":
    key = jax.random.PRNGKey(0)

    # Config 1: tiny MLP (exercises fused path + single-K layer-wise path)
    k_x1, k_p1, k_x2, k_p2 = jax.random.split(key, 4)
    batch1, insize1, outsize1, hsizes1 = 2, 16, 8, [64]
    x1 = jax.random.normal(k_x1, (batch1, insize1), jnp.float32)
    params1 = init_mlp_params(k_p1, insize1, outsize1, hsizes1)
    prep1 = prepare_mlp_params(params1)

    out1_fused = mlp_forward(x1, prep1, outsize1)
    out1_tiled = mlp_forward(x1, prep1, outsize1, force_layerwise=True)

    # Config 2: wide input (exercises the multi-K tiled kernel, k_steps > 1)
    batch2, insize2, outsize2, hsizes2 = 4, 2304, 8, [64]
    x2 = jax.random.normal(k_x2, (batch2, insize2), jnp.float32)
    params2 = init_mlp_params(k_p2, insize2, outsize2, hsizes2)
    prep2 = prepare_mlp_params(params2)

    out2_fused = mlp_forward(x2, prep2, outsize2)
    out2_tiled = mlp_forward(x2, prep2, outsize2, force_layerwise=True)

    jax.block_until_ready((out1_fused, out1_tiled, out2_fused, out2_tiled))

    ref1 = mlp_reference(x1, params1)
    ref2 = mlp_reference(x2, params2)
    assert out1_fused.shape == (batch1, outsize1)
    assert out1_tiled.shape == (batch1, outsize1)
    assert out2_fused.shape == (batch2, outsize2)
    assert out2_tiled.shape == (batch2, outsize2)
    assert jnp.allclose(out1_fused, ref1, atol=1e-3, rtol=1e-3)
    assert jnp.allclose(out1_tiled, ref1, atol=1e-3, rtol=1e-3)
    assert jnp.allclose(out2_fused, ref2, atol=1e-3, rtol=1e-3)
    assert jnp.allclose(out2_tiled, ref2, atol=1e-3, rtol=1e-3)

    print("KERNEL_OK")
</pallas_src>

<mosaic_0001>
module attributes {stable_mosaic.version = 11 : i64} {
  func.func @_fused_mlp_kernel(%arg0: i32, %arg1: memref<8x16xbf16, #tpu.memory_space<vmem>>, %arg2: memref<16x128xbf16, #tpu.memory_space<vmem>>, %arg3: memref<128x128xbf16, #tpu.memory_space<vmem>>, %arg4: memref<1x128xf32, #tpu.memory_space<vmem>>, %arg5: memref<1x128xf32, #tpu.memory_space<vmem>>, %arg6: memref<8x128xf32, #tpu.memory_space<vmem>>) attributes {dimension_semantics = [#tpu.dimension_semantics<parallel>], iteration_bounds = array<i64: 2>, scalar_prefetch = 0 : i64, scratch_operands = 0 : i64, tpu.core_type = #tpu.core_type<tc>, window_params = [{transform_indices = @transform_0, window_bounds = array<i64: 8, 16>}, {pipeline_mode = #tpu.pipeline_mode<synchronous>, transform_indices = @transform_1, window_bounds = array<i64: 16, 128>}, {pipeline_mode = #tpu.pipeline_mode<synchronous>, transform_indices = @transform_2, window_bounds = array<i64: 128, 128>}, {pipeline_mode = #tpu.pipeline_mode<synchronous>, transform_indices = @transform_3, window_bounds = array<i64: 1, 128>}, {pipeline_mode = #tpu.pipeline_mode<synchronous>, transform_indices = @transform_4, window_bounds = array<i64: 1, 128>}, {transform_indices = @transform_5, window_bounds = array<i64: 8, 128>}]} {
    %c0 = arith.constant 0 : index
    %c0_0 = arith.constant 0 : index
    %0 = vector.load %arg1[%c0, %c0_0] : memref<8x16xbf16, #tpu.memory_space<vmem>>, vector<8x16xbf16>
    %c0_1 = arith.constant 0 : index
    %c0_2 = arith.constant 0 : index
    %1 = vector.load %arg2[%c0_1, %c0_2] : memref<16x128xbf16, #tpu.memory_space<vmem>>, vector<16x128xbf16>
    %cst = arith.constant dense<0.000000e+00> : vector<8x128xf32>
    %2 = tpu.matmul %0, %1, %cst {dimension_numbers = #tpu.dot_dimension_numbers<[1], [0], [0], [1], [0, 0, 1, 1], [], []>} : vector<8x16xbf16>, vector<16x128xbf16>, vector<8x128xf32> -> vector<8x128xf32>
    %c0_3 = arith.constant 0 : index
    %c0_4 = arith.constant 0 : index
    %3 = vector.load %arg4[%c0_3, %c0_4] : memref<1x128xf32, #tpu.memory_space<vmem>>, vector<1x128xf32>
    %4 = vector.broadcast %3 : vector<1x128xf32> to vector<8x128xf32>
    %5 = arith.addf %2, %4 : vector<8x128xf32>
    %cst_5 = arith.constant 0.000000e+00 : f32
    %6 = vector.broadcast %cst_5 : f32 to vector<8x128xf32>
    %7 = arith.maximumf %5, %6 : vector<8x128xf32>
    %8 = arith.truncf %7 : vector<8x128xf32> to vector<8x128xbf16>
    %c0_6 = arith.constant 0 : index
    %c0_7 = arith.constant 0 : index
    %9 = vector.load %arg3[%c0_6, %c0_7] : memref<128x128xbf16, #tpu.memory_space<vmem>>, vector<128x128xbf16>
    %cst_8 = arith.constant dense<0.000000e+00> : vector<8x128xf32>
    %10 = tpu.matmul %8, %9, %cst_8 {dimension_numbers = #tpu.dot_dimension_numbers<[1], [0], [0], [1], [0, 0, 1, 1], [], []>} : vector<8x128xbf16>, vector<128x128xbf16>, vector<8x128xf32> -> vector<8x128xf32>
    %c0_9 = arith.constant 0 : index
    %c0_10 = arith.constant 0 : index
    %11 = vector.load %arg5[%c0_9, %c0_10] : memref<1x128xf32, #tpu.memory_space<vmem>>, vector<1x128xf32>
    %12 = vector.broadcast %11 : vector<1x128xf32> to vector<8x128xf32>
    %13 = arith.addf %10, %12 : vector<8x128xf32>
    %c0_11 = arith.constant 0 : index
    %c0_12 = arith.constant 0 : index
    %14 = vector.load %arg6[%c0_11, %c0_12] : memref<8x128xf32, #tpu.memory_space<vmem>>, vector<8x128xf32>
    tpu.vector_store %arg6[%c0_11, %c0_12], %13 {strides = array<i32>} : memref<8x128xf32, #tpu.memory_space<vmem>>, vector<8x128xf32>,
    return
  }
  func.func @transform_0(%arg0: i32) -> (i32, i32) {
    %c0_i32 = arith.constant 0 : i32
    %c0_i32_0 = arith.constant 0 : i32
    return %arg0, %c0_i32 : i32, i32
  }
  func.func @transform_1(%arg0: i32) -> (i32, i32) {
    %c0_i32 = arith.constant 0 : i32
    %c0_i32_0 = arith.constant 0 : i32
    %c0_i32_1 = arith.constant 0 : i32
    return %c0_i32, %c0_i32_0 : i32, i32
  }
  func.func @transform_2(%arg0: i32) -> (i32, i32) {
    %c0_i32 = arith.constant 0 : i32
    %c0_i32_0 = arith.constant 0 : i32
    %c0_i32_1 = arith.constant 0 : i32
    return %c0_i32, %c0_i32_0 : i32, i32
  }
  func.func @transform_3(%arg0: i32) -> (i32, i32) {
    %c0_i32 = arith.constant 0 : i32
    %c0_i32_0 = arith.constant 0 : i32
    %c0_i32_1 = arith.constant 0 : i32
    return %c0_i32, %c0_i32_0 : i32, i32
  }
  func.func @transform_4(%arg0: i32) -> (i32, i32) {
    %c0_i32 = arith.constant 0 : i32
    %c0_i32_0 = arith.constant 0 : i32
    %c0_i32_1 = arith.constant 0 : i32
    return %c0_i32, %c0_i32_0 : i32, i32
  }
  func.func @transform_5(%arg0: i32) -> (i32, i32) {
    %c0_i32 = arith.constant 0 : i32
    %c0_i32_0 = arith.constant 0 : i32
    return %arg0, %c0_i32 : i32, i32
  }
}

module attributes {stable_mosaic.version = 11 : i64} {
  func.func @_fused_mlp_kernel(%arg0: i32, %arg1: memref<8x16xbf16, #tpu.memory_space<vmem>>, %arg2: memref<16x128xbf16, #tpu.memory_space<vmem>>, %arg3: memref<128x128xbf16, #tpu.memory_space<vmem>>, %arg4: memref<1x128xf32, #tpu.memory_space<vmem>>, %arg5: memref<1x128xf32, #tpu.memory_space<vmem>>, %arg6: memref<8x128xf32, #tpu.memory_space<vmem>>) attributes {dimension_semantics = [#tpu.dimension_semantics<parallel>], iteration_bounds = array<i64: 2>, scalar_prefetch = 0 : i64, scratch_operands = 0 : i64, tpu.core_type = #tpu.core_type<tc>, window_params = [{transform_indices = @transform_0, window_bounds = array<i64: 8, 16>}, {pipeline_mode = #tpu.pipeline_mode<synchronous>, transform_indices = @transform_1, window_bounds = array<i64: 16, 128>}, {pipeline_mode = #tpu.pipeline_mode<synchronous>, transform_indices = @transform_2, window_bounds = array<i64: 128, 128>}, {pipeline_mode = #tpu.pipeline_mode<synchronous>, transform_indices = @transform_3, window_bounds = array<i64: 1, 128>}, {pipeline_mode = #tpu.pipeline_mode<synchronous>, transform_indices = @transform_4, window_bounds = array<i64: 1, 128>}, {transform_indices = @transform_5, window_bounds = array<i64: 8, 128>}]} {
    %c0 = arith.constant 0 : index
    %c0_0 = arith.constant 0 : index
    %0 = vector.load %arg1[%c0, %c0_0] : memref<8x16xbf16, #tpu.memory_space<vmem>>, vector<8x16xbf16>
    %c0_1 = arith.constant 0 : index
    %c0_2 = arith.constant 0 : index
    %1 = vector.load %arg2[%c0_1, %c0_2] : memref<16x128xbf16, #tpu.memory_space<vmem>>, vector<16x128xbf16>
    %cst = arith.constant dense<0.000000e+00> : vector<8x128xf32>
    %2 = tpu.matmul %0, %1, %cst {dimension_numbers = #tpu.dot_dimension_numbers<[1], [0], [0], [1], [0, 0, 1, 1], [], []>} : vector<8x16xbf16>, vector<16x128xbf16>, vector<8x128xf32> -> vector<8x128xf32>
    %c0_3 = arith.constant 0 : index
    %c0_4 = arith.constant 0 : index
    %3 = vector.load %arg4[%c0_3, %c0_4] : memref<1x128xf32, #tpu.memory_space<vmem>>, vector<1x128xf32>
    %4 = vector.broadcast %3 : vector<1x128xf32> to vector<8x128xf32>
    %5 = arith.addf %2, %4 : vector<8x128xf32>
    %cst_5 = arith.constant 0.000000e+00 : f32
    %6 = vector.broadcast %cst_5 : f32 to vector<8x128xf32>
    %7 = arith.maximumf %5, %6 : vector<8x128xf32>
    %8 = arith.truncf %7 : vector<8x128xf32> to vector<8x128xbf16>
    %c0_6 = arith.constant 0 : index
    %c0_7 = arith.constant 0 : index
    %9 = vector.load %arg3[%c0_6, %c0_7] : memref<128x128xbf16, #tpu.memory_space<vmem>>, vector<128x128xbf16>
    %cst_8 = arith.constant dense<0.000000e+00> : vector<8x128xf32>
    %10 = tpu.matmul %8, %9, %cst_8 {dimension_numbers = #tpu.dot_dimension_numbers<[1], [0], [0], [1], [0, 0, 1, 1], [], []>} : vector<8x128xbf16>, vector<128x128xbf16>, vector<8x128xf32> -> vector<8x128xf32>
    %c0_9 = arith.constant 0 : index
    %c0_10 = arith.constant 0 : index
    %11 = vector.load %arg5[%c0_9, %c0_10] : memref<1x128xf32, #tpu.memory_space<vmem>>, vector<1x128xf32>
    %12 = vector.broadcast %11 : vector<1x128xf32> to vector<8x128xf32>
    %13 = arith.addf %10, %12 : vector<8x128xf32>
    %c0_11 = arith.constant 0 : index
    %c0_12 = arith.constant 0 : index
    %14 = vector.load %arg6[%c0_11, %c0_12] : memref<8x128xf32, #tpu.memory_space<vmem>>, vector<8x128xf32>
    tpu.vector_store %arg6[%c0_11, %c0_12], %13 {strides = array<i32>} : memref<8x128xf32, #tpu.memory_space<vmem>>, vector<8x128xf32>,
    return
  }
  func.func @transform_0(%arg0: i32) -> (i32, i32) {
    %c0_i32 = arith.constant 0 : i32
    %c0_i32_0 = arith.constant 0 : i32
    return %arg0, %c0_i32 : i32, i32
  }
  func.func @transform_1(%arg0: i32) -> (i32, i32) {
    %c0_i32 = arith.constant 0 : i32
    %c0_i32_0 = arith.constant 0 : i32
    %c0_i32_1 = arith.constant 0 : i32
    return %c0_i32, %c0_i32_0 : i32, i32
  }
  func.func @transform_2(%arg0: i32) -> (i32, i32) {
    %c0_i32 = arith.constant 0 : i32
    %c0_i32_0 = arith.constant 0 : i32
    %c0_i32_1 = arith.constant 0 : i32
    return %c0_i32, %c0_i32_0 : i32, i32
  }
  func.func @transform_3(%arg0: i32) -> (i32, i32) {
    %c0_i32 = arith.constant 0 : i32
    %c0_i32_0 = arith.constant 0 : i32
    %c0_i32_1 = arith.constant 0 : i32
    return %c0_i32, %c0_i32_0 : i32, i32
  }
  func.func @transform_4(%arg0: i32) -> (i32, i32) {
    %c0_i32 = arith.constant 0 : i32
    %c0_i32_0 = arith.constant 0 : i32
    %c0_i32_1 = arith.constant 0 : i32
    return %c0_i32, %c0_i32_0 : i32, i32
  }
  func.func @transform_5(%arg0: i32) -> (i32, i32) {
    %c0_i32 = arith.constant 0 : i32
    %c0_i32_0 = arith.constant 0 : i32
    return %arg0, %c0_i32 : i32, i32
  }
}

</mosaic_0001>

<llo_original>
// kernel: tpu_custom_call.1
$region0: #{tpu_custom_call.1}
  #allocation0 [shape = 'u32[]', space=smem, size = 0x4, offset = 0x4, fixed_abs, tag = 'smem constant byte address 0x4 - core index']
  #allocation1 [shape = 'u32[72,128]{1,0:T(1,128)}', space=vmem, size = 0x9000, scoped, tag = 'internal scratch']
  %s0 = inlined_call_operand.hbm [shape: bf16[16,16], index: 0, kind: input, shape index: {}]
  %s1 = inlined_call_operand.hbm [shape: bf16[16,128], index: 1, kind: input, shape index: {}]
  %s2 = inlined_call_operand.hbm [shape: bf16[128,128], index: 2, kind: input, shape index: {}]
  %s3 = inlined_call_operand.vmem [shape: f32[1,128], index: 3, kind: input, shape index: {}]
  %s4 = inlined_call_operand.vmem [shape: f32[1,128], index: 4, kind: input, shape index: {}]
  %s5 = inlined_call_operand.hbm [shape: f32[16,128], index: 5, kind: output, shape index: {}]
  %s6 = sld [smem:[#allocation0]]
  $region65: #{tpu_custom_call.1} parent=0
    _
  %s8 = ssub.s32 1, %s6
  %s9 = scalar_select 0, %s8, %s6
  $region1: #{tpu_custom_call.1} parent=0
    #allocation2 [shape = 'u8[4096]{0}', space=vmem, size = 0x1000, scoped, tag = 'input window, operand 0']
    #allocation3 [shape = 's32[2]{0}', space=sflag, size = 0x8, scoped, tag = 'scoped memory for tpu_custom_call.1']
    #allocation4 [shape = 's32[2]{0}', space=sflag, size = 0x8, scoped, tag = 'scoped memory for tpu_custom_call.1']
    #allocation5 [shape = 'u8[4096]{0}', space=vmem, size = 0x1000, scoped, tag = 'input window, operand 1, single buffered']
    #allocation6 [shape = 's32[1]{0}', space=sflag, size = 0x4, scoped, tag = 'scoped memory for tpu_custom_call.1']
    #allocation7 [shape = 'u8[32768]{0}', space=vmem, size = 0x8000, scoped, tag = 'input window, operand 2, single buffered']
    #allocation8 [shape = 'u8[8192]{0}', space=vmem, size = 0x2000, scoped, tag = 'output window, operand 0']
    %10 = vsyncpa [#allocation3], 0
    %s11 = scalar_lea.sflag [#allocation3], 1
    %12 = vsyncpa %s11, 0
    %13 = vsyncpa [#allocation6], 0
    %14 = vsyncpa [#allocation4], 0
    %s15 = scalar_lea.sflag [#allocation4], 1
    %16 = vsyncpa %s15, 0
    loop: start=0, step=1, limit=4
    $region2: #{tpu_custom_call.1} parent=1 // loop_pre_header
      _
    $region3: #{tpu_custom_call.1} parent=1 // loop_header
      %s18 = sphi 0, %s22
      %p19 = scmp.ge.s32.totalorder %s18, 4
      %s28 = sphi 0, %s30
      %s31 = sphi 0, %s28
      %s32 = sphi 0, %s31
      %s48 = sphi 0, %s32
      %s52 = sphi 0, %s52
      %s54 = sphi 0, %s52
      %s55 = sphi 0, %s54
      %s69 = sphi 0, %s55
      %s73 = sphi 0, %s73
      %s75 = sphi 0, %s73
      %s76 = sphi 0, %s75
      %s90 = sphi 0, %s76
      %s94 = sphi 0, %s94
      %s96 = sphi 0, %s94
      %s97 = sphi 0, %s96
      %s111 = sphi 0, %s97
      %s115 = sphi 0, %s115
      %s117 = sphi 0, %s115
      %s118 = sphi 0, %s117
      %s132 = sphi 0, %s118
      %s138 = sphi 0, %s140
      %s141 = sphi 0, %s138
      %s142 = sphi 0, %s141
      %s158 = sphi 0, %s142
    $region4: #{tpu_custom_call.1} parent=1 // loop_header_branch
      %21 = sbr.rel (%p19) target = $region8
    $region5: #{tpu_custom_call.1} parent=1 // loop_body
      %s23 = ssub.s32 %s18, 1
      %s24 = ssub.s32 %s18, 2
      %s25 = sadd.s32 %s18, 1
      %s26 = ssub.s32 %s18, %s25
      %p27 = scmp.eq.s32.totalorder %s26, 0
      %s29 = sadd.s32 %s28, 1
      %s30 = scalar_select %p27, %s28, %s29
      %p33 = pneg %p27
      %p34 = scmp.eq.s32.totalorder %s18, 1
      %p35 = por %p33, %p34
      %p36 = scmp.ne.s32.totalorder %s28, %s31
      %p37 = scmp.eq.s32.totalorder %s18, 0
      %p38 = por %p36, %p37
      %p39 = scmp.ne.s32.totalorder %s28, %s31
      %p40 = scmp.eq.s32.totalorder %s23, 1
      %p41 = por %p39, %p40
      %p42 = scmp.ne.s32.totalorder %s31, %s32
      %p43 = scmp.eq.s32.totalorder %s23, 0
      %p44 = por %p42, %p43
      %p45 = scmp.ne.s32.totalorder %s31, %s32
      %p46 = scmp.eq.s32.totalorder %s24, 1
      %p47 = por %p45, %p46
      %p49 = scmp.ne.s32.totalorder %s32, %s48
      %p50 = scmp.eq.s32.totalorder %s24, 0
      %p51 = por %p49, %p50
      %s53 = sadd.s32 %s52, 1
      %p56 = scmp.eq.s32.totalorder %s18, 1
      %p57 = scmp.ne.s32.totalorder %s52, %s54
      %p58 = scmp.eq.s32.totalorder %s18, 0
      %p59 = por %p57, %p58
      %p60 = scmp.ne.s32.totalorder %s52, %s54
      %p61 = scmp.eq.s32.totalorder %s23, 1
      %p62 = por %p60, %p61
      %p63 = scmp.ne.s32.totalorder %s54, %s55
      %p64 = scmp.eq.s32.totalorder %s23, 0
      %p65 = por %p63, %p64
      %p66 = scmp.ne.s32.totalorder %s54, %s55
      %p67 = scmp.eq.s32.totalorder %s24, 1
      %p68 = por %p66, %p67
      %p70 = scmp.ne.s32.totalorder %s55, %s69
      %p71 = scmp.eq.s32.totalorder %s24, 0
      %p72 = por %p70, %p71
      %s74 = sadd.s32 %s73, 1
      %p77 = scmp.eq.s32.totalorder %s18, 1
      %p78 = scmp.ne.s32.totalorder %s73, %s75
      %p79 = scmp.eq.s32.totalorder %s18, 0
      %p80 = por %p78, %p79
      %p81 = scmp.ne.s32.totalorder %s73, %s75
      %p82 = scmp.eq.s32.totalorder %s23, 1
      %p83 = por %p81, %p82
      %p84 = scmp.ne.s32.totalorder %s75, %s76
      %p85 = scmp.eq.s32.totalorder %s23, 0
      %p86 = por %p84, %p85
      %p87 = scmp.ne.s32.totalorder %s75, %s76
      %p88 = scmp.eq.s32.totalorder %s24, 1
      %p89 = por %p87, %p88
      %p91 = scmp.ne.s32.totalorder %s76, %s90
      %p92 = scmp.eq.s32.totalorder %s24, 0
      %p93 = por %p91, %p92
      %s95 = sadd.s32 %s94, 1
      %p98 = scmp.eq.s32.totalorder %s18, 1
      %p99 = scmp.ne.s32.totalorder %s94, %s96
      %p100 = scmp.eq.s32.totalorder %s18, 0
      %p101 = por %p99, %p100
      %p102 = scmp.ne.s32.totalorder %s94, %s96
      %p103 = scmp.eq.s32.totalorder %s23, 1
      %p104 = por %p102, %p103
      %p105 = scmp.ne.s32.totalorder %s96, %s97
      %p106 = scmp.eq.s32.totalorder %s23, 0
      %p107 = por %p105, %p106
      %p108 = scmp.ne.s32.totalorder %s96, %s97
      %p109 = scmp.eq.s32.totalorder %s24, 1
      %p110 = por %p108, %p109
      %p112 = scmp.ne.s32.totalorder %s97, %s111
      %p113 = scmp.eq.s32.totalorder %s24, 0
      %p114 = por %p112, %p113
      %s116 = sadd.s32 %s115, 1
      %p119 = scmp.eq.s32.totalorder %s18, 1
      %p120 = scmp.ne.s32.totalorder %s115, %s117
      %p121 = scmp.eq.s32.totalorder %s18, 0
      %p122 = por %p120, %p121
      %p123 = scmp.ne.s32.totalorder %s115, %s117
      %p124 = scmp.eq.s32.totalorder %s23, 1
      %p125 = por %p123, %p124
      %p126 = scmp.ne.s32.totalorder %s117, %s118
      %p127 = scmp.eq.s32.totalorder %s23, 0
      %p128 = por %p126, %p127
      %p129 = scmp.ne.s32.totalorder %s117, %s118
      %p130 = scmp.eq.s32.totalorder %s24, 1
      %p131 = por %p129, %p130
      %p133 = scmp.ne.s32.totalorder %s118, %s132
      %p134 = scmp.eq.s32.totalorder %s24, 0
      %p135 = por %p133, %p134
      %s136 = ssub.s32 %s18, %s25
      %p137 = scmp.eq.s32.totalorder %s136, 0
      %s139 = sadd.s32 %s138, 1
      %s140 = scalar_select %p137, %s138, %s139
      %p143 = pneg %p137
      %p144 = scmp.eq.s32.totalorder %s18, 1
      %p145 = por %p143, %p144
      %p146 = scmp.ne.s32.totalorder %s138, %s141
      %p147 = scmp.eq.s32.totalorder %s18, 0
      %p148 = por %p146, %p147
      %p149 = scmp.ne.s32.totalorder %s138, %s141
      %p150 = scmp.eq.s32.totalorder %s23, 1
      %p151 = por %p149, %p150
      %p152 = scmp.ne.s32.totalorder %s141, %s142
      %p153 = scmp.eq.s32.totalorder %s23, 0
      %p154 = por %p152, %p153
      %p155 = scmp.ne.s32.totalorder %s141, %s142
      %p156 = scmp.eq.s32.totalorder %s24, 1
      %p157 = por %p155, %p156
      %p159 = scmp.ne.s32.totalorder %s142, %s158
      %p160 = scmp.eq.s32.totalorder %s24, 0
      %p161 = por %p159, %p160
      %p162 = scmp.le.s32.totalorder 1, %s18
      %p163 = scmp.lt.s32.totalorder %s18, 3
      %p164 = pnand %p162, %p163
      %p165 = pneg %p164
      // Predicated region
      $region9: #{tpu_custom_call.1} parent=5 // pred_check
        _
      $region10: #{tpu_custom_call.1} parent=5 // pred_check_branch
        %167 = sbr.rel (%p164) target = $region12
      $region11: #{tpu_custom_call.1} parent=5 // pred_region
        %s168 = ssub.s32 %s18, 1
        // Predicated region
        $region13: #{tpu_custom_call.1} parent=11 // pred_check
          %p169 = pneg %p65
        $region14: #{tpu_custom_call.1} parent=11 // pred_check_branch
          %171 = sbr.rel (%p169) target = $region16
        $region15: #{tpu_custom_call.1} parent=11 // pred_region
          %173 = vsyncadd [#allocation6], 0
          %s174 = sshll.u32 %s1, 4
          %s175 = int_to_ptr.hbm [resolvable:$true] %s174
          %s176 = sshll.u32 [#allocation5], 4
          %s177 = int_to_ptr.vmem [resolvable:$true] %s176
          %182 = dma.hbm_to_vmem [thread:$0]  %s175, 128, %s177, [#allocation6], 64, 64, 4
        $region16: #{tpu_custom_call.1} parent=11 // pred_fallthru
          _
        // Predicated region
        $region17: #{tpu_custom_call.1} parent=11 // pred_check
          %p183 = pneg %p86
        $region18: #{tpu_custom_call.1} parent=11 // pred_check_branch
          %185 = sbr.rel (%p183) target = $region20
        $region19: #{tpu_custom_call.1} parent=11 // pred_region
          %187 = vsyncadd [#allocation6], 0
          %s188 = sshll.u32 %s2, 4
          %s189 = int_to_ptr.hbm [resolvable:$true] %s188
          %s190 = sshll.u32 [#allocation7], 4
          %s191 = int_to_ptr.vmem [resolvable:$true] %s190
          %196 = dma.hbm_to_vmem [thread:$0]  %s189, 1024, %s191, [#allocation6], 64, 64, 4
        $region20: #{tpu_custom_call.1} parent=11 // pred_fallthru
          _
        // Predicated region
        $region21: #{tpu_custom_call.1} parent=11 // pred_check
          %p197 = pneg %p107
        $region22: #{tpu_custom_call.1} parent=11 // pred_check_branch
          %199 = sbr.rel (%p197) target = $region24
        $region23: #{tpu_custom_call.1} parent=11 // pred_region
          _
        $region24: #{tpu_custom_call.1} parent=11 // pred_fallthru
          _
        // Predicated region
        $region25: #{tpu_custom_call.1} parent=11 // pred_check
          %p200 = pneg %p128
        $region26: #{tpu_custom_call.1} parent=11 // pred_check_branch
          %202 = sbr.rel (%p200) target = $region28
        $region27: #{tpu_custom_call.1} parent=11 // pred_region
          _
        $region28: #{tpu_custom_call.1} parent=11 // pred_fallthru
          _
      $region12: #{tpu_custom_call.1} parent=5 // pred_fallthru
        _
      %p203 = scmp.lt.s32.totalorder %s18, 2
      // Predicated region
      $region29: #{tpu_custom_call.1} parent=5 // pred_check
        %p204 = pneg %p203
      $region30: #{tpu_custom_call.1} parent=5 // pred_check_branch
        %206 = sbr.rel (%p204) target = $region32
      $region31: #{tpu_custom_call.1} parent=5 // pred_region
        // Predicated region
        $region33: #{tpu_custom_call.1} parent=31 // pred_check
          %p207 = pneg %p38
        $region34: #{tpu_custom_call.1} parent=31 // pred_check_branch
          %209 = sbr.rel (%p207) target = $region36
        $region35: #{tpu_custom_call.1} parent=31 // pred_region
          %s210 = sand.u32 %s28, 1
          %s211 = scalar_lea.sflag [#allocation3], %s210
          %s212 = sand.u32 %s28, 1
          %s213 = smul.addr %s212, 4
          %s214 = scalar_lea.vmem [#allocation2], %s213
          %216 = vsyncadd %s211, 0
          %s217 = smul.addr %s18, 4
          %s218 = scalar_lea.hbm %s0, %s217
          %s220 = sshll.u32 %s218, 4
          %s221 = int_to_ptr.hbm [resolvable:$true] %s220
          %s222 = sshll.u32 %s214, 4
          %s223 = int_to_ptr.vmem [resolvable:$true] %s222
          %225 = dma.hbm_to_vmem [thread:$0]  %s221, 64, %s223, %s211
        $region36: #{tpu_custom_call.1} parent=31 // pred_fallthru
          _
      $region32: #{tpu_custom_call.1} parent=5 // pred_fallthru
        _
      %p226 = scmp.le.s32.totalorder 1, %s18
      %p227 = scmp.lt.s32.totalorder %s18, 3
      %p228 = pnand %p226, %p227
      %p229 = pneg %p228
      // Predicated region
      $region37: #{tpu_custom_call.1} parent=5 // pred_check
        _
      $region38: #{tpu_custom_call.1} parent=5 // pred_check_branch
        %231 = sbr.rel (%p228) target = $region40
      $region39: #{tpu_custom_call.1} parent=5 // pred_region
        %s232 = ssub.s32 %s18, 1
        %s233 = sand.u32 %s31, 1
        %s234 = scalar_lea.sflag [#allocation3], %s233
        %s235 = sand.u32 %s31, 1
        %s236 = smul.addr %s235, 4
        %s237 = scalar_lea.vmem [#allocation2], %s236
        // Predicated region
        $region41: #{tpu_custom_call.1} parent=39 // pred_check
          %p238 = pneg %p44
        $region42: #{tpu_custom_call.1} parent=39 // pred_check_branch
          %240 = sbr.rel (%p238) target = $region44
        $region43: #{tpu_custom_call.1} parent=39 // pred_region
          %242 = dma.done %s234, 64
        $region44: #{tpu_custom_call.1} parent=39 // pred_fallthru
          _
        // Predicated region
        $region45: #{tpu_custom_call.1} parent=39 // pred_check
          %p243 = pneg %p65
        $region46: #{tpu_custom_call.1} parent=39 // pred_check_branch
          %245 = sbr.rel (%p243) target = $region48
        $region47: #{tpu_custom_call.1} parent=39 // pred_region
          %247 = dma.done [#allocation6], 128
        $region48: #{tpu_custom_call.1} parent=39 // pred_fallthru
          _
        // Predicated region
        $region49: #{tpu_custom_call.1} parent=39 // pred_check
          %p248 = pneg %p86
        $region50: #{tpu_custom_call.1} parent=39 // pred_check_branch
          %250 = sbr.rel (%p248) target = $region52
        $region51: #{tpu_custom_call.1} parent=39 // pred_region
          %252 = dma.done [#allocation6], 1024
        $region52: #{tpu_custom_call.1} parent=39 // pred_fallthru
          _
        %s253 = sand.u32 %s31, 1
        %s254 = scalar_lea.sflag [#allocation3], %s253
        %s255 = sand.u32 %s31, 1
        %s256 = smul.addr %s255, 4
        %s257 = scalar_lea.vmem [#allocation2], %s256
        %p258 = pneg %p44
        %p259 = pneg %p41
        %p260 = pneg %p65
        %p261 = pneg %p62
        %p262 = pneg %p86
        %p263 = pneg %p83
        %p264 = pneg %p107
        %p265 = pneg %p104
        %p266 = pneg %p128
        %p267 = pneg %p125
        %p268 = pneg %p154
        %p269 = pneg %p151
        %s270 = sand.u32 %s141, 1
        %s271 = scalar_lea.sflag [#allocation4], %s270
        %s272 = sand.u32 %s141, 1
        %s273 = smul.addr %s272, 8
        %s274 = scalar_lea.vmem [#allocation8], %s273
        %v276 = vld [vmem:[%s237] sm:$0xf]
        %v277 = vld [vmem:[#allocation5] sm:$0xf]
        %v278 = vld [vmem:[#allocation5 + $0x4] sm:$0xf]
        %v279 = vld [vmem:[%s3] sm:$0x1]
        %v281 = vperm.slane %v279, 0
        %v285 = vunpack.c.l.b16 %v277
        %v286 = vunpack.c.l.b16 %v278
        %v287 = vpack.c.b16 %v286, %v285
        %vm289 = vcmask 130048
        %v291 = vsel %vm289, %v276, 0
        %293 = vmatpush.bf16.msra.mxu0 0
        %294 = vmatpush.bf16.msra.mxu0 0
        %295 = vmatpush.bf16.msra.mxu0 0
        %296 = vmatpush.bf16.msra.mxu0 0
        %297 = vmatpush.bf16.msra.mxu0 0
        %298 = vmatpush.bf16.msra.mxu0 0
        %299 = vmatpush.bf16.msra.mxu0 0
        %300 = vmatpush.bf16.msra.mxu0 %v287
        %301 = vmatmul.bf16.gmra.mxu0 %v291
        %v302 = vpop.f32.mrf.mxu0
        %v303 = vadd.f32 %v281, %v302
        %v304 = vpop.f32.mrf.mxu0
        %305 = vdwg.mxu0
        %v306 = vmax.f32 %v303, 0.0
        %v307 = vpack.c.bf16 %v306, %v306
        %v308 = vld [vmem:[#allocation7] sm:$0xf]
        %v309 = vld [vmem:[#allocation7 + $0x4] sm:$0xf]
        %v310 = vld [vmem:[#allocation7 + $0x8] sm:$0xf]
        %v311 = vld [vmem:[#allocation7 + $0xc] sm:$0xf]
        %v312 = vld [vmem:[#allocation7 + $0x10] sm:$0xf]
        %v313 = vld [vmem:[#allocation7 + $0x14] sm:$0xf]
        %v314 = vld [vmem:[#allocation7 + $0x18] sm:$0xf]
        %v315 = vld [vmem:[#allocation7 + $0x1c] sm:$0xf]
        %v316 = vld [vmem:[#allocation7 + $0x20] sm:$0xf]
        %v317 = vld [vmem:[#allocation7 + $0x24] sm:$0xf]
        %v318 = vld [vmem:[#allocation7 + $0x28] sm:$0xf]
        %v319 = vld [vmem:[#allocation7 + $0x2c] sm:$0xf]
        %v320 = vld [vmem:[#allocation7 + $0x30] sm:$0xf]
        %v321 = vld [vmem:[#allocation7 + $0x34] sm:$0xf]
        %v322 = vld [vmem:[#allocation7 + $0x38] sm:$0xf]
        %v323 = vld [vmem:[#allocation7 + $0x3c] sm:$0xf]
        %v324 = vld [vmem:[%s4] sm:$0x1]
        %v326 = vperm.slane %v324, 0
        %v344 = vunpack.c.l.b16 %v308
        %v345 = vunpack.c.l.b16 %v309
        %v346 = vunpack.c.l.b16 %v310
        %v347 = vunpack.c.l.b16 %v311
        %v348 = vunpack.c.l.b16 %v312
        %v349 = vunpack.c.l.b16 %v313
        %v350 = vunpack.c.l.b16 %v314
        %v351 = vunpack.c.l.b16 %v315
        %v352 = vunpack.c.l.b16 %v316
        %v353 = vunpack.c.l.b16 %v317
        %v354 = vunpack.c.l.b16 %v318
        %v355 = vunpack.c.l.b16 %v319
        %v356 = vunpack.c.l.b16 %v320
        %v357 = vunpack.c.l.b16 %v321
        %v358 = vunpack.c.l.b16 %v322
        %v359 = vunpack.c.l.b16 %v323
        %v360 = vpack.c.b16 %v345, %v344
        %v361 = vpack.c.b16 %v347, %v346
        %v362 = vpack.c.b16 %v349, %v348
        %v363 = vpack.c.b16 %v351, %v350
        %v364 = vpack.c.b16 %v353, %v352
        %v365 = vpack.c.b16 %v355, %v354
        %v366 = vpack.c.b16 %v357, %v356
        %v367 = vpack.c.b16 %v359, %v358
        %376 = vmatpush.bf16.msra.mxu0 %v367
        %377 = vmatpush.bf16.msra.mxu0 %v366
        %378 = vmatpush.bf16.msra.mxu0 %v365
        %379 = vmatpush.bf16.msra.mxu0 %v364
        %380 = vmatpush.bf16.msra.mxu0 %v363
        %381 = vmatpush.bf16.msra.mxu0 %v362
        %382 = vmatpush.bf16.msra.mxu0 %v361
        %383 = vmatpush.bf16.msra.mxu0 %v360
        %384 = vmatmul.bf16.gmra.mxu0 %v307
        %v385 = vpop.f32.mrf.mxu0
        %v386 = vadd.f32 %v326, %v385
        %v387 = vpop.f32.mrf.mxu0
        %388 = vdwg.mxu0
        %389 = vst [vmem:[%s274] sm:$0xff] %v386
        %s390 = sand.u32 %s141, 1
        %s391 = scalar_lea.sflag [#allocation4], %s390
        %s392 = sand.u32 %s141, 1
        %s393 = smul.addr %s392, 8
        %s394 = scalar_lea.vmem [#allocation8], %s393
        // Predicated region
        $region53: #{tpu_custom_call.1} parent=39 // pred_check
          %p395 = pneg %p151
        $region54: #{tpu_custom_call.1} parent=39 // pred_check_branch
          %397 = sbr.rel (%p395) target = $region56
        $region55: #{tpu_custom_call.1} parent=39 // pred_region
          %399 = vsyncadd %s391, 0
          %s400 = smul.addr %s23, 8
          %s401 = scalar_lea.hbm %s5, %s400
          %s403 = sshll.u32 %s394, 4
          %s404 = int_to_ptr.vmem [resolvable:$true] %s403
          %s405 = sshll.u32 %s401, 4
          %s406 = int_to_ptr.hbm [resolvable:$true] %s405
          %408 = dma.vmem_to_hbm [thread:$0]  %s404, 128, %s406, %s391
        $region56: #{tpu_custom_call.1} parent=39 // pred_fallthru
          _
      $region40: #{tpu_custom_call.1} parent=5 // pred_fallthru
        _
      %p409 = scmp.le.s32.totalorder 2, %s18
      // Predicated region
      $region57: #{tpu_custom_call.1} parent=5 // pred_check
        %p410 = pneg %p409
      $region58: #{tpu_custom_call.1} parent=5 // pred_check_branch
        %412 = sbr.rel (%p410) target = $region60
      $region59: #{tpu_custom_call.1} parent=5 // pred_region
        %s413 = ssub.s32 %s18, 2
        // Predicated region
        $region61: #{tpu_custom_call.1} parent=59 // pred_check
          %p414 = pneg %p157
        $region62: #{tpu_custom_call.1} parent=59 // pred_check_branch
          %416 = sbr.rel (%p414) target = $region64
        $region63: #{tpu_custom_call.1} parent=59 // pred_region
          %s417 = sand.u32 %s142, 1
          %s418 = scalar_lea.sflag [#allocation4], %s417
          %s419 = sand.u32 %s142, 1
          %s420 = smul.addr %s419, 8
          %s421 = scalar_lea.vmem [#allocation8], %s420
          %423 = dma.done %s418, 128
        $region64: #{tpu_custom_call.1} parent=59 // pred_fallthru
          _
      $region60: #{tpu_custom_call.1} parent=5 // pred_fallthru
        _
    $region6: #{tpu_custom_call.1} parent=1 // loop_footer
      %s22 = sadd.s32 1, %s18
    $region7: #{tpu_custom_call.1} parent=1 // loop_footer_branch
      %17 = sbr.rel target = $region3
    $region8: #{tpu_custom_call.1} parent=1 // loop_exit
      _
    %424 = vsyncpa [#allocation3], 1
    %s425 = scalar_lea.sflag [#allocation3], 1
    %426 = vsyncpa %s425, 1
    %427 = vsyncpa [#allocation6], 1
    %428 = vsyncpa [#allocation4], 1
    %s429 = scalar_lea.sflag [#allocation4], 1
    %430 = vsyncpa %s429, 1

// kernel: tpu_custom_call.1
$region0: #{tpu_custom_call.1}
  #allocation0 [shape = 'u32[]', space=smem, size = 0x4, offset = 0x4, fixed_abs, tag = 'smem constant byte address 0x4 - core index']
  #allocation1 [shape = 'u32[72,128]{1,0:T(1,128)}', space=vmem, size = 0x9000, scoped, tag = 'internal scratch']
  %s0 = inlined_call_operand.hbm [shape: bf16[16,16], index: 0, kind: input, shape index: {}]
  %s1 = inlined_call_operand.hbm [shape: bf16[16,128], index: 1, kind: input, shape index: {}]
  %s2 = inlined_call_operand.hbm [shape: bf16[128,128], index: 2, kind: input, shape index: {}]
  %s3 = inlined_call_operand.vmem [shape: f32[1,128], index: 3, kind: input, shape index: {}]
  %s4 = inlined_call_operand.vmem [shape: f32[1,128], index: 4, kind: input, shape index: {}]
  %s5 = inlined_call_operand.hbm [shape: f32[16,128], index: 5, kind: output, shape index: {}]
  %s6 = sld [smem:[#allocation0]]
  $region65: #{tpu_custom_call.1} parent=0
    _
  %s8 = ssub.s32 1, %s6
  %s9 = scalar_select 0, %s8, %s6
  $region1: #{tpu_custom_call.1} parent=0
    #allocation2 [shape = 'u8[4096]{0}', space=vmem, size = 0x1000, scoped, tag = 'input window, operand 0']
    #allocation3 [shape = 's32[2]{0}', space=sflag, size = 0x8, scoped, tag = 'scoped memory for tpu_custom_call.1']
    #allocation4 [shape = 's32[2]{0}', space=sflag, size = 0x8, scoped, tag = 'scoped memory for tpu_custom_call.1']
    #allocation5 [shape = 'u8[4096]{0}', space=vmem, size = 0x1000, scoped, tag = 'input window, operand 1, single buffered']
    #allocation6 [shape = 's32[1]{0}', space=sflag, size = 0x4, scoped, tag = 'scoped memory for tpu_custom_call.1']
    #allocation7 [shape = 'u8[32768]{0}', space=vmem, size = 0x8000, scoped, tag = 'input window, operand 2, single buffered']
    #allocation8 [shape = 'u8[8192]{0}', space=vmem, size = 0x2000, scoped, tag = 'output window, operand 0']
    %10 = vsyncpa [#allocation3], 0
    %s11 = scalar_lea.sflag [#allocation3], 1
    %12 = vsyncpa %s11, 0
    %13 = vsyncpa [#allocation6], 0
    %14 = vsyncpa [#allocation4], 0
    %s15 = scalar_lea.sflag [#allocation4], 1
    %16 = vsyncpa %s15, 0
    loop: start=0, step=1, limit=4
    $region2: #{tpu_custom_call.1} parent=1 // loop_pre_header
      _
    $region3: #{tpu_custom_call.1} parent=1 // loop_header
      %s18 = sphi 0, %s22
      %p19 = scmp.ge.s32.totalorder %s18, 4
      %s28 = sphi 0, %s30
      %s31 = sphi 0, %s28
      %s32 = sphi 0, %s31
      %s48 = sphi 0, %s32
      %s52 = sphi 0, %s52
      %s54 = sphi 0, %s52
      %s55 = sphi 0, %s54
      %s69 = sphi 0, %s55
      %s73 = sphi 0, %s73
      %s75 = sphi 0, %s73
      %s76 = sphi 0, %s75
      %s90 = sphi 0, %s76
      %s94 = sphi 0, %s94
      %s96 = sphi 0, %s94
      %s97 = sphi 0, %s96
      %s111 = sphi 0, %s97
      %s115 = sphi 0, %s115
      %s117 = sphi 0, %s115
      %s118 = sphi 0, %s117
      %s132 = sphi 0, %s118
      %s138 = sphi 0, %s140
      %s141 = sphi 0, %s138
      %s142 = sphi 0, %s141
      %s158 = sphi 0, %s142
    $region4: #{tpu_custom_call.1} parent=1 // loop_header_branch
      %21 = sbr.rel (%p19) target = $region8
    $region5: #{tpu_custom_call.1} parent=1 // loop_body
      %s23 = ssub.s32 %s18, 1
      %s24 = ssub.s32 %s18, 2
      %s25 = sadd.s32 %s18, 1
      %s26 = ssub.s32 %s18, %s25
      %p27 = scmp.eq.s32.totalorder %s26, 0
      %s29 = sadd.s32 %s28, 1
      %s30 = scalar_select %p27, %s28, %s29
      %p33 = pneg %p27
      %p34 = scmp.eq.s32.totalorder %s18, 1
      %p35 = por %p33, %p34
      %p36 = scmp.ne.s32.totalorder %s28, %s31
      %p37 = scmp.eq.s32.totalorder %s18, 0
      %p38 = por %p36, %p37
      %p39 = scmp.ne.s32.totalorder %s28, %s31
      %p40 = scmp.eq.s32.totalorder %s23, 1
      %p41 = por %p39, %p40
      %p42 = scmp.ne.s32.totalorder %s31, %s32
      %p43 = scmp.eq.s32.totalorder %s23, 0
      %p44 = por %p42, %p43
      %p45 = scmp.ne.s32.totalorder %s31, %s32
      %p46 = scmp.eq.s32.totalorder %s24, 1
      %p47 = por %p45, %p46
      %p49 = scmp.ne.s32.totalorder %s32, %s48
      %p50 = scmp.eq.s32.totalorder %s24, 0
      %p51 = por %p49, %p50
      %s53 = sadd.s32 %s52, 1
      %p56 = scmp.eq.s32.totalorder %s18, 1
      %p57 = scmp.ne.s32.totalorder %s52, %s54
      %p58 = scmp.eq.s32.totalorder %s18, 0
      %p59 = por %p57, %p58
      %p60 = scmp.ne.s32.totalorder %s52, %s54
      %p61 = scmp.eq.s32.totalorder %s23, 1
      %p62 = por %p60, %p61
      %p63 = scmp.ne.s32.totalorder %s54, %s55
      %p64 = scmp.eq.s32.totalorder %s23, 0
      %p65 = por %p63, %p64
      %p66 = scmp.ne.s32.totalorder %s54, %s55
      %p67 = scmp.eq.s32.totalorder %s24, 1
      %p68 = por %p66, %p67
      %p70 = scmp.ne.s32.totalorder %s55, %s69
      %p71 = scmp.eq.s32.totalorder %s24, 0
      %p72 = por %p70, %p71
      %s74 = sadd.s32 %s73, 1
      %p77 = scmp.eq.s32.totalorder %s18, 1
      %p78 = scmp.ne.s32.totalorder %s73, %s75
      %p79 = scmp.eq.s32.totalorder %s18, 0
      %p80 = por %p78, %p79
      %p81 = scmp.ne.s32.totalorder %s73, %s75
      %p82 = scmp.eq.s32.totalorder %s23, 1
      %p83 = por %p81, %p82
      %p84 = scmp.ne.s32.totalorder %s75, %s76
      %p85 = scmp.eq.s32.totalorder %s23, 0
      %p86 = por %p84, %p85
      %p87 = scmp.ne.s32.totalorder %s75, %s76
      %p88 = scmp.eq.s32.totalorder %s24, 1
      %p89 = por %p87, %p88
      %p91 = scmp.ne.s32.totalorder %s76, %s90
      %p92 = scmp.eq.s32.totalorder %s24, 0
      %p93 = por %p91, %p92
      %s95 = sadd.s32 %s94, 1
      %p98 = scmp.eq.s32.totalorder %s18, 1
      %p99 = scmp.ne.s32.totalorder %s94, %s96
      %p100 = scmp.eq.s32.totalorder %s18, 0
      %p101 = por %p99, %p100
      %p102 = scmp.ne.s32.totalorder %s94, %s96
      %p103 = scmp.eq.s32.totalorder %s23, 1
      %p104 = por %p102, %p103
      %p105 = scmp.ne.s32.totalorder %s96, %s97
      %p106 = scmp.eq.s32.totalorder %s23, 0
      %p107 = por %p105, %p106
      %p108 = scmp.ne.s32.totalorder %s96, %s97
      %p109 = scmp.eq.s32.totalorder %s24, 1
      %p110 = por %p108, %p109
      %p112 = scmp.ne.s32.totalorder %s97, %s111
      %p113 = scmp.eq.s32.totalorder %s24, 0
      %p114 = por %p112, %p113
      %s116 = sadd.s32 %s115, 1
      %p119 = scmp.eq.s32.totalorder %s18, 1
      %p120 = scmp.ne.s32.totalorder %s115, %s117
      %p121 = scmp.eq.s32.totalorder %s18, 0
      %p122 = por %p120, %p121
      %p123 = scmp.ne.s32.totalorder %s115, %s117
      %p124 = scmp.eq.s32.totalorder %s23, 1
      %p125 = por %p123, %p124
      %p126 = scmp.ne.s32.totalorder %s117, %s118
      %p127 = scmp.eq.s32.totalorder %s23, 0
      %p128 = por %p126, %p127
      %p129 = scmp.ne.s32.totalorder %s117, %s118
      %p130 = scmp.eq.s32.totalorder %s24, 1
      %p131 = por %p129, %p130
      %p133 = scmp.ne.s32.totalorder %s118, %s132
      %p134 = scmp.eq.s32.totalorder %s24, 0
      %p135 = por %p133, %p134
      %s136 = ssub.s32 %s18, %s25
      %p137 = scmp.eq.s32.totalorder %s136, 0
      %s139 = sadd.s32 %s138, 1
      %s140 = scalar_select %p137, %s138, %s139
      %p143 = pneg %p137
      %p144 = scmp.eq.s32.totalorder %s18, 1
      %p145 = por %p143, %p144
      %p146 = scmp.ne.s32.totalorder %s138, %s141
      %p147 = scmp.eq.s32.totalorder %s18, 0
      %p148 = por %p146, %p147
      %p149 = scmp.ne.s32.totalorder %s138, %s141
      %p150 = scmp.eq.s32.totalorder %s23, 1
      %p151 = por %p149, %p150
      %p152 = scmp.ne.s32.totalorder %s141, %s142
      %p153 = scmp.eq.s32.totalorder %s23, 0
      %p154 = por %p152, %p153
      %p155 = scmp.ne.s32.totalorder %s141, %s142
      %p156 = scmp.eq.s32.totalorder %s24, 1
      %p157 = por %p155, %p156
      %p159 = scmp.ne.s32.totalorder %s142, %s158
      %p160 = scmp.eq.s32.totalorder %s24, 0
      %p161 = por %p159, %p160
      %p162 = scmp.le.s32.totalorder 1, %s18
      %p163 = scmp.lt.s32.totalorder %s18, 3
      %p164 = pnand %p162, %p163
      %p165 = pneg %p164
      // Predicated region
      $region9: #{tpu_custom_call.1} parent=5 // pred_check
        _
      $region10: #{tpu_custom_call.1} parent=5 // pred_check_branch
        %167 = sbr.rel (%p164) target = $region12
      $region11: #{tpu_custom_call.1} parent=5 // pred_region
        %s168 = ssub.s32 %s18, 1
        // Predicated region
        $region13: #{tpu_custom_call.1} parent=11 // pred_check
          %p169 = pneg %p65
        $region14: #{tpu_custom_call.1} parent=11 // pred_check_branch
          %171 = sbr.rel (%p169) target = $region16
        $region15: #{tpu_custom_call.1} parent=11 // pred_region
          %173 = vsyncadd [#allocation6], 0
          %s174 = sshll.u32 %s1, 4
          %s175 = int_to_ptr.hbm [resolvable:$true] %s174
          %s176 = sshll.u32 [#allocation5], 4
          %s177 = int_to_ptr.vmem [resolvable:$true] %s176
          %182 = dma.hbm_to_vmem [thread:$0]  %s175, 128, %s177, [#allocation6], 64, 64, 4
        $region16: #{tpu_custom_call.1} parent=11 // pred_fallthru
          _
        // Predicated region
        $region17: #{tpu_custom_call.1} parent=11 // pred_check
          %p183 = pneg %p86
        $region18: #{tpu_custom_call.1} parent=11 // pred_check_branch
          %185 = sbr.rel (%p183) target = $region20
        $region19: #{tpu_custom_call.1} parent=11 // pred_region
          %187 = vsyncadd [#allocation6], 0
          %s188 = sshll.u32 %s2, 4
          %s189 = int_to_ptr.hbm [resolvable:$true] %s188
          %s190 = sshll.u32 [#allocation7], 4
          %s191 = int_to_ptr.vmem [resolvable:$true] %s190
          %196 = dma.hbm_to_vmem [thread:$0]  %s189, 1024, %s191, [#allocation6], 64, 64, 4
        $region20: #{tpu_custom_call.1} parent=11 // pred_fallthru
          _
        // Predicated region
        $region21: #{tpu_custom_call.1} parent=11 // pred_check
          %p197 = pneg %p107
        $region22: #{tpu_custom_call.1} parent=11 // pred_check_branch
          %199 = sbr.rel (%p197) target = $region24
        $region23: #{tpu_custom_call.1} parent=11 // pred_region
          _
        $region24: #{tpu_custom_call.1} parent=11 // pred_fallthru
          _
        // Predicated region
        $region25: #{tpu_custom_call.1} parent=11 // pred_check
          %p200 = pneg %p128
        $region26: #{tpu_custom_call.1} parent=11 // pred_check_branch
          %202 = sbr.rel (%p200) target = $region28
        $region27: #{tpu_custom_call.1} parent=11 // pred_region
          _
        $region28: #{tpu_custom_call.1} parent=11 // pred_fallthru
          _
      $region12: #{tpu_custom_call.1} parent=5 // pred_fallthru
        _
      %p203 = scmp.lt.s32.totalorder %s18, 2
      // Predicated region
      $region29: #{tpu_custom_call.1} parent=5 // pred_check
        %p204 = pneg %p203
      $region30: #{tpu_custom_call.1} parent=5 // pred_check_branch
        %206 = sbr.rel (%p204) target = $region32
      $region31: #{tpu_custom_call.1} parent=5 // pred_region
        // Predicated region
        $region33: #{tpu_custom_call.1} parent=31 // pred_check
          %p207 = pneg %p38
        $region34: #{tpu_custom_call.1} parent=31 // pred_check_branch
          %209 = sbr.rel (%p207) target = $region36
        $region35: #{tpu_custom_call.1} parent=31 // pred_region
          %s210 = sand.u32 %s28, 1
          %s211 = scalar_lea.sflag [#allocation3], %s210
          %s212 = sand.u32 %s28, 1
          %s213 = smul.addr %s212, 4
          %s214 = scalar_lea.vmem [#allocation2], %s213
          %216 = vsyncadd %s211, 0
          %s217 = smul.addr %s18, 4
          %s218 = scalar_lea.hbm %s0, %s217
          %s220 = sshll.u32 %s218, 4
          %s221 = int_to_ptr.hbm [resolvable:$true] %s220
          %s222 = sshll.u32 %s214, 4
          %s223 = int_to_ptr.vmem [resolvable:$true] %s222
          %225 = dma.hbm_to_vmem [thread:$0]  %s221, 64, %s223, %s211
        $region36: #{tpu_custom_call.1} parent=31 // pred_fallthru
          _
      $region32: #{tpu_custom_call.1} parent=5 // pred_fallthru
        _
      %p226 = scmp.le.s32.totalorder 1, %s18
      %p227 = scmp.lt.s32.totalorder %s18, 3
      %p228 = pnand %p226, %p227
      %p229 = pneg %p228
      // Predicated region
      $region37: #{tpu_custom_call.1} parent=5 // pred_check
        _
      $region38: #{tpu_custom_call.1} parent=5 // pred_check_branch
        %231 = sbr.rel (%p228) target = $region40
      $region39: #{tpu_custom_call.1} parent=5 // pred_region
        %s232 = ssub.s32 %s18, 1
        %s233 = sand.u32 %s31, 1
        %s234 = scalar_lea.sflag [#allocation3], %s233
        %s235 = sand.u32 %s31, 1
        %s236 = smul.addr %s235, 4
        %s237 = scalar_lea.vmem [#allocation2], %s236
        // Predicated region
        $region41: #{tpu_custom_call.1} parent=39 // pred_check
          %p238 = pneg %p44
        $region42: #{tpu_custom_call.1} parent=39 // pred_check_branch
          %240 = sbr.rel (%p238) target = $region44
        $region43: #{tpu_custom_call.1} parent=39 // pred_region
          %242 = dma.done %s234, 64
        $region44: #{tpu_custom_call.1} parent=39 // pred_fallthru
          _
        // Predicated region
        $region45: #{tpu_custom_call.1} parent=39 // pred_check
          %p243 = pneg %p65
        $region46: #{tpu_custom_call.1} parent=39 // pred_check_branch
          %245 = sbr.rel (%p243) target = $region48
        $region47: #{tpu_custom_call.1} parent=39 // pred_region
          %247 = dma.done [#allocation6], 128
        $region48: #{tpu_custom_call.1} parent=39 // pred_fallthru
          _
        // Predicated region
        $region49: #{tpu_custom_call.1} parent=39 // pred_check
          %p248 = pneg %p86
        $region50: #{tpu_custom_call.1} parent=39 // pred_check_branch
          %250 = sbr.rel (%p248) target = $region52
        $region51: #{tpu_custom_call.1} parent=39 // pred_region
          %252 = dma.done [#allocation6], 1024
        $region52: #{tpu_custom_call.1} parent=39 // pred_fallthru
          _
        %s253 = sand.u32 %s31, 1
        %s254 = scalar_lea.sflag [#allocation3], %s253
        %s255 = sand.u32 %s31, 1
        %s256 = smul.addr %s255, 4
        %s257 = scalar_lea.vmem [#allocation2], %s256
        %p258 = pneg %p44
        %p259 = pneg %p41
        %p260 = pneg %p65
        %p261 = pneg %p62
        %p262 = pneg %p86
        %p263 = pneg %p83
        %p264 = pneg %p107
        %p265 = pneg %p104
        %p266 = pneg %p128
        %p267 = pneg %p125
        %p268 = pneg %p154
        %p269 = pneg %p151
        %s270 = sand.u32 %s141, 1
        %s271 = scalar_lea.sflag [#allocation4], %s270
        %s272 = sand.u32 %s141, 1
        %s273 = smul.addr %s272, 8
        %s274 = scalar_lea.vmem [#allocation8], %s273
        %v276 = vld [vmem:[%s237] sm:$0xf]
        %v277 = vld [vmem:[#allocation5] sm:$0xf]
        %v278 = vld [vmem:[#allocation5 + $0x4] sm:$0xf]
        %v279 = vld [vmem:[%s3] sm:$0x1]
        %v281 = vperm.slane %v279, 0
        %v285 = vunpack.c.l.b16 %v277
        %v286 = vunpack.c.l.b16 %v278
        %v287 = vpack.c.b16 %v286, %v285
        %vm289 = vcmask 130048
        %v291 = vsel %vm289, %v276, 0
        %293 = vmatpush.bf16.msra.mxu0 0
        %294 = vmatpush.bf16.msra.mxu0 0
        %295 = vmatpush.bf16.msra.mxu0 0
        %296 = vmatpush.bf16.msra.mxu0 0
        %297 = vmatpush.bf16.msra.mxu0 0
        %298 = vmatpush.bf16.msra.mxu0 0
        %299 = vmatpush.bf16.msra.mxu0 0
        %300 = vmatpush.bf16.msra.mxu0 %v287
        %301 = vmatmul.bf16.gmra.mxu0 %v291
        %v302 = vpop.f32.mrf.mxu0
        %v303 = vadd.f32 %v281, %v302
        %v304 = vpop.f32.mrf.mxu0
        %305 = vdwg.mxu0
        %v306 = vmax.f32 %v303, 0.0
        %v307 = vpack.c.bf16 %v306, %v306
        %v308 = vld [vmem:[#allocation7] sm:$0xf]
        %v309 = vld [vmem:[#allocation7 + $0x4] sm:$0xf]
        %v310 = vld [vmem:[#allocation7 + $0x8] sm:$0xf]
        %v311 = vld [vmem:[#allocation7 + $0xc] sm:$0xf]
        %v312 = vld [vmem:[#allocation7 + $0x10] sm:$0xf]
        %v313 = vld [vmem:[#allocation7 + $0x14] sm:$0xf]
        %v314 = vld [vmem:[#allocation7 + $0x18] sm:$0xf]
        %v315 = vld [vmem:[#allocation7 + $0x1c] sm:$0xf]
        %v316 = vld [vmem:[#allocation7 + $0x20] sm:$0xf]
        %v317 = vld [vmem:[#allocation7 + $0x24] sm:$0xf]
        %v318 = vld [vmem:[#allocation7 + $0x28] sm:$0xf]
        %v319 = vld [vmem:[#allocation7 + $0x2c] sm:$0xf]
        %v320 = vld [vmem:[#allocation7 + $0x30] sm:$0xf]
        %v321 = vld [vmem:[#allocation7 + $0x34] sm:$0xf]
        %v322 = vld [vmem:[#allocation7 + $0x38] sm:$0xf]
        %v323 = vld [vmem:[#allocation7 + $0x3c] sm:$0xf]
        %v324 = vld [vmem:[%s4] sm:$0x1]
        %v326 = vperm.slane %v324, 0
        %v344 = vunpack.c.l.b16 %v308
        %v345 = vunpack.c.l.b16 %v309
        %v346 = vunpack.c.l.b16 %v310
        %v347 = vunpack.c.l.b16 %v311
        %v348 = vunpack.c.l.b16 %v312
        %v349 = vunpack.c.l.b16 %v313
        %v350 = vunpack.c.l.b16 %v314
        %v351 = vunpack.c.l.b16 %v315
        %v352 = vunpack.c.l.b16 %v316
        %v353 = vunpack.c.l.b16 %v317
        %v354 = vunpack.c.l.b16 %v318
        %v355 = vunpack.c.l.b16 %v319
        %v356 = vunpack.c.l.b16 %v320
        %v357 = vunpack.c.l.b16 %v321
        %v358 = vunpack.c.l.b16 %v322
        %v359 = vunpack.c.l.b16 %v323
        %v360 = vpack.c.b16 %v345, %v344
        %v361 = vpack.c.b16 %v347, %v346
        %v362 = vpack.c.b16 %v349, %v348
        %v363 = vpack.c.b16 %v351, %v350
        %v364 = vpack.c.b16 %v353, %v352
        %v365 = vpack.c.b16 %v355, %v354
        %v366 = vpack.c.b16 %v357, %v356
        %v367 = vpack.c.b16 %v359, %v358
        %376 = vmatpush.bf16.msra.mxu0 %v367
        %377 = vmatpush.bf16.msra.mxu0 %v366
        %378 = vmatpush.bf16.msra.mxu0 %v365
        %379 = vmatpush.bf16.msra.mxu0 %v364
        %380 = vmatpush.bf16.msra.mxu0 %v363
        %381 = vmatpush.bf16.msra.mxu0 %v362
        %382 = vmatpush.bf16.msra.mxu0 %v361
        %383 = vmatpush.bf16.msra.mxu0 %v360
        %384 = vmatmul.bf16.gmra.mxu0 %v307
        %v385 = vpop.f32.mrf.mxu0
        %v386 = vadd.f32 %v326, %v385
        %v387 = vpop.f32.mrf.mxu0
        %388 = vdwg.mxu0
        %389 = vst [vmem:[%s274] sm:$0xff] %v386
        %s390 = sand.u32 %s141, 1
        %s391 = scalar_lea.sflag [#allocation4], %s390
        %s392 = sand.u32 %s141, 1
        %s393 = smul.addr %s392, 8
        %s394 = scalar_lea.vmem [#allocation8], %s393
        // Predicated region
        $region53: #{tpu_custom_call.1} parent=39 // pred_check
          %p395 = pneg %p151
        $region54: #{tpu_custom_call.1} parent=39 // pred_check_branch
          %397 = sbr.rel (%p395) target = $region56
        $region55: #{tpu_custom_call.1} parent=39 // pred_region
          %399 = vsyncadd %s391, 0
          %s400 = smul.addr %s23, 8
          %s401 = scalar_lea.hbm %s5, %s400
          %s403 = sshll.u32 %s394, 4
          %s404 = int_to_ptr.vmem [resolvable:$true] %s403
          %s405 = sshll.u32 %s401, 4
          %s406 = int_to_ptr.hbm [resolvable:$true] %s405
          %408 = dma.vmem_to_hbm [thread:$0]  %s404, 128, %s406, %s391
        $region56: #{tpu_custom_call.1} parent=39 // pred_fallthru
          _
      $region40: #{tpu_custom_call.1} parent=5 // pred_fallthru
        _
      %p409 = scmp.le.s32.totalorder 2, %s18
      // Predicated region
      $region57: #{tpu_custom_call.1} parent=5 // pred_check
        %p410 = pneg %p409
      $region58: #{tpu_custom_call.1} parent=5 // pred_check_branch
        %412 = sbr.rel (%p410) target = $region60
      $region59: #{tpu_custom_call.1} parent=5 // pred_region
        %s413 = ssub.s32 %s18, 2
        // Predicated region
        $region61: #{tpu_custom_call.1} parent=59 // pred_check
          %p414 = pneg %p157
        $region62: #{tpu_custom_call.1} parent=59 // pred_check_branch
          %416 = sbr.rel (%p414) target = $region64
        $region63: #{tpu_custom_call.1} parent=59 // pred_region
          %s417 = sand.u32 %s142, 1
          %s418 = scalar_lea.sflag [#allocation4], %s417
          %s419 = sand.u32 %s142, 1
          %s420 = smul.addr %s419, 8
          %s421 = scalar_lea.vmem [#allocation8], %s420
          %423 = dma.done %s418, 128
        $region64: #{tpu_custom_call.1} parent=59 // pred_fallthru
          _
      $region60: #{tpu_custom_call.1} parent=5 // pred_fallthru
        _
    $region6: #{tpu_custom_call.1} parent=1 // loop_footer
      %s22 = sadd.s32 1, %s18
    $region7: #{tpu_custom_call.1} parent=1 // loop_footer_branch
      %17 = sbr.rel target = $region3
    $region8: #{tpu_custom_call.1} parent=1 // loop_exit
      _
    %424 = vsyncpa [#allocation3], 1
    %s425 = scalar_lea.sflag [#allocation3], 1
    %426 = vsyncpa %s425, 1
    %427 = vsyncpa [#allocation6], 1
    %428 = vsyncpa [#allocation4], 1
    %s429 = scalar_lea.sflag [#allocation4], 1
    %430 = vsyncpa %s429, 1

</llo_original>
